<compile_context>
chip_gen: v7x
topology: tpu7x:2x2x1
jax: 0.10.0
libtpu: 0.0.40
codegen_flags: <defaults>
</compile_context>

<pallas_src>
import jax
import jax.numpy as jnp
from jax.experimental import pallas as pl
from jax.experimental.pallas import tpu as pltpu

_MIB = 1024 * 1024


def _dw3x3_kernel(w_ref, b_ref, x_ref, o_ref):
    # w_ref: (9,) f32 SMEM (row-major 3x3 filter); b_ref: (1,) f32 SMEM.
    # x_ref / o_ref: (1, TC, H, W) VMEM blocks in NCHW layout.
    x = x_ref[0].astype(jnp.float32)                  # (TC, H, W); no-op for f32
    _, H, W = x.shape

    # Column (w +- 1) taps: XLU lane roll + zero the wrapped edge column.
    col = jax.lax.broadcasted_iota(jnp.int32, x.shape, 2)
    x_l = jnp.where(col == 0, 0.0, pltpu.roll(x, 1, axis=2))          # x[.., w-1]
    x_r = jnp.where(col == W - 1, 0.0, pltpu.roll(x, W - 1, axis=2))  # x[.., w+1]

    # Per-kernel-row combos; all still row-aligned with x.
    s0 = w_ref[0] * x_l + w_ref[1] * x + w_ref[2] * x_r               # needs row h-1
    s1 = w_ref[3] * x_l + w_ref[4] * x + w_ref[5] * x_r + b_ref[0]    # row h (+bias)
    s2 = w_ref[6] * x_l + w_ref[7] * x + w_ref[8] * x_r               # needs row h+1

    # Row (h +- 1) taps: XLU sublane roll + zero the wrapped edge row.
    row = jax.lax.broadcasted_iota(jnp.int32, x.shape, 1)
    out = (s1
           + jnp.where(row == 0, 0.0, pltpu.roll(s0, 1, axis=1))
           + jnp.where(row == H - 1, 0.0, pltpu.roll(s2, H - 1, axis=1)))

    o_ref[0] = out.astype(o_ref.dtype)


def _vmem_budgets():
    """(per-step working-set budget, vmem_limit_bytes), generation-aware."""
    cap = 64 * _MIB
    try:
        cap = int(getattr(pltpu.get_tpu_info(), "vmem_capacity_bytes", cap))
    except Exception:
        pass  # conservative 64 MiB default if hardware query is unavailable
    if cap >= 100 * _MIB:             # v5e / v6e class (128 MiB VMEM)
        return 36 * _MIB, 96 * _MIB
    return 14 * _MIB, 48 * _MIB       # v7x class (64 MiB VMEM)


def _pick_channel_block(B, C, H, W, in_itemsize, out_itemsize, budget_bytes,
                        min_steps=8):
    """Pick TC (a divisor of C): largest block whose estimated per-step VMEM
    working set (double-buffered in+out blocks + ~6 f32 temps: x, x_l, x_r,
    s0/s1/s2) fits `budget_bytes`, while keeping >= `min_steps` grid steps
    whenever the problem is large enough to allow it (pipelining / megacore)."""
    hw = H * W

    def working_set(tc):
        blk = tc * hw
        return 2 * blk * in_itemsize + 2 * blk * out_itemsize + 6 * blk * 4

    divisors = [d for d in range(1, C + 1) if C % d == 0]
    fitting = [d for d in divisors if working_set(d) <= budget_bytes]
    if not fitting:
        # Even one (H, W) plane blows the budget (only for extreme H*W).
        # TODO(synk): sub-tile H with a 1-row halo (overlapping blocks) for
        # extreme spatial sizes; CLIPSeg-scale shapes always fit at TC=1.
        return 1
    pipelined = [d for d in fitting if B * (C // d) >= min_steps]
    if pipelined:
        return max(pipelined)
    return min(fitting)  # small problem: maximize step count for pipelining


def depthwise_clipseg_conv(x, weight, bias):
    """x: (B, C, H, W); weight: (3, 3); bias: (1,). Returns (B, C, H, W)."""
    B, C, H, W = x.shape
    w_flat = jnp.asarray(weight, jnp.float32).reshape(9)
    b_flat = jnp.asarray(bias, jnp.float32).reshape(1)

    budget, vmem_limit = _vmem_budgets()
    itemsize = jnp.dtype(x.dtype).itemsize
    TC = _pick_channel_block(B, C, H, W, itemsize, itemsize, budget)
    grid = (B, C // TC)

    return pl.pallas_call(
        _dw3x3_kernel,
        out_shape=jax.ShapeDtypeStruct((B, C, H, W), x.dtype),
        grid_spec=pltpu.PrefetchScalarGridSpec(
            num_scalar_prefetch=0,
            grid=grid,
            in_specs=[
                pl.BlockSpec(memory_space=pltpu.MemorySpace.SMEM),  # weight (9,)
                pl.BlockSpec(memory_space=pltpu.MemorySpace.SMEM),  # bias (1,)
                pl.BlockSpec((1, TC, H, W), lambda b, cb: (b, cb, 0, 0)),
            ],
            out_specs=pl.BlockSpec((1, TC, H, W), lambda b, cb: (b, cb, 0, 0)),
        ),
        compiler_params=pltpu.CompilerParams(
            dimension_semantics=("parallel", "parallel"),
            vmem_limit_bytes=vmem_limit,
        ),
    )(w_flat, b_flat, x)


def _reference(x, weight, bias):
    """Pure-JAX reference (matches PyTorch Conv2d(1,1,3,padding=1) per channel)."""
    B, C, H, W = x.shape
    xp = jnp.pad(x, ((0, 0), (0, 0), (1, 1), (1, 1)))
    out = jnp.zeros_like(x)
    for kh in range(3):
        for kw in range(3):
            out = out + weight[kh, kw] * xp[:, :, kh:kh + H, kw:kw + W]
    return out + bias[0]


if __name__ == "__main__":
    key = jax.random.PRNGKey(0)
    kx, kw, kb = jax.random.split(key, 3)

    B, C, H, W = 2, 4, 16, 16
    x = jax.random.normal(kx, (B, C, H, W), dtype=jnp.float32)

    # Deterministic parameter init mimicking nn.Conv2d(1, 1, 3) default
    # (uniform in [-1/sqrt(fan_in), 1/sqrt(fan_in)], fan_in = 1*3*3 = 9).
    bound = 1.0 / 3.0
    weight = jax.random.uniform(kw, (3, 3), jnp.float32, -bound, bound)
    bias = jax.random.uniform(kb, (1,), jnp.float32, -bound, bound)

    out = depthwise_clipseg_conv(x, weight, bias)
    out = jax.block_until_ready(out)

    ref = _reference(x, weight, bias)
    assert out.shape == (B, C, H, W)
    assert jnp.allclose(out, ref, atol=1e-5, rtol=1e-5), "mismatch vs reference"

    print("KERNEL_OK")
</pallas_src>

<mosaic_0001>
module attributes {stable_mosaic.version = 11 : i64} {
  func.func @_dw3x3_kernel(%arg0: i32, %arg1: i32, %arg2: memref<9xf32, #tpu.memory_space<smem>>, %arg3: memref<1xf32, #tpu.memory_space<smem>>, %arg4: memref<1x1x16x16xf32, #tpu.memory_space<vmem>>, %arg5: memref<1x1x16x16xf32, #tpu.memory_space<vmem>>) attributes {dimension_semantics = [#tpu.dimension_semantics<parallel>, #tpu.dimension_semantics<parallel>], iteration_bounds = array<i64: 2, 4>, scalar_prefetch = 0 : i64, scratch_operands = 0 : i64, tpu.core_type = #tpu.core_type<tc>, window_params = [{transform_indices = @transform_0, window_bounds = array<i64: 9>}, {transform_indices = @transform_1, window_bounds = array<i64: 1>}, {transform_indices = @transform_2, window_bounds = array<i64: 1, 1, 16, 16>}, {transform_indices = @transform_3, window_bounds = array<i64: 1, 1, 16, 16>}]} {
    %c0 = arith.constant 0 : index
    %c0_0 = arith.constant 0 : index
    %c0_1 = arith.constant 0 : index
    %c0_2 = arith.constant 0 : index
    %0 = vector.load %arg4[%c0, %c0_0, %c0_1, %c0_2] : memref<1x1x16x16xf32, #tpu.memory_space<vmem>>, vector<1x1x16x16xf32>
    %1 = vector.shape_cast %0 : vector<1x1x16x16xf32> to vector<1x16x16xf32>
    %2 = tpu.iota {dimensions = array<i32: 2>} : vector<1x16x16xi32>
    %c0_i32 = arith.constant 0 : i32
    %3 = vector.broadcast %c0_i32 : i32 to vector<1x16x16xi32>
    %4 = arith.cmpi eq, %2, %3 : vector<1x16x16xi32>
    %c1_i32 = arith.constant 1 : i32
    %5 = tpu.dynamic_rotate %1 by %c1_i32 dim 2 : vector<1x16x16xf32>, i32 -> vector<1x16x16xf32>
    %cst = arith.constant 0.000000e+00 : f32
    %6 = vector.broadcast %cst : f32 to vector<1x16x16xf32>
    %7 = arith.select %4, %6, %5 : vector<1x16x16xi1>, vector<1x16x16xf32>
    %c15_i32 = arith.constant 15 : i32
    %8 = vector.broadcast %c15_i32 : i32 to vector<1x16x16xi32>
    %9 = arith.cmpi eq, %2, %8 : vector<1x16x16xi32>
    %c15_i32_3 = arith.constant 15 : i32
    %10 = tpu.dynamic_rotate %1 by %c15_i32_3 dim 2 : vector<1x16x16xf32>, i32 -> vector<1x16x16xf32>
    %cst_4 = arith.constant 0.000000e+00 : f32
    %11 = vector.broadcast %cst_4 : f32 to vector<1x16x16xf32>
    %12 = arith.select %9, %11, %10 : vector<1x16x16xi1>, vector<1x16x16xf32>
    %c0_5 = arith.constant 0 : index
    %13 = memref.load %arg2[%c0_5] : memref<9xf32, #tpu.memory_space<smem>>
    %14 = vector.broadcast %13 : f32 to vector<1x16x16xf32>
    %15 = arith.mulf %14, %7 : vector<1x16x16xf32>
    %c1 = arith.constant 1 : index
    %16 = memref.load %arg2[%c1] : memref<9xf32, #tpu.memory_space<smem>>
    %17 = vector.broadcast %16 : f32 to vector<1x16x16xf32>
    %18 = arith.mulf %17, %1 : vector<1x16x16xf32>
    %19 = arith.addf %15, %18 : vector<1x16x16xf32>
    %c2 = arith.constant 2 : index
    %20 = memref.load %arg2[%c2] : memref<9xf32, #tpu.memory_space<smem>>
    %21 = vector.broadcast %20 : f32 to vector<1x16x16xf32>
    %22 = arith.mulf %21, %12 : vector<1x16x16xf32>
    %23 = arith.addf %19, %22 : vector<1x16x16xf32>
    %c3 = arith.constant 3 : index
    %24 = memref.load %arg2[%c3] : memref<9xf32, #tpu.memory_space<smem>>
    %25 = vector.broadcast %24 : f32 to vector<1x16x16xf32>
    %26 = arith.mulf %25, %7 : vector<1x16x16xf32>
    %c4 = arith.constant 4 : index
    %27 = memref.load %arg2[%c4] : memref<9xf32, #tpu.memory_space<smem>>
    %28 = vector.broadcast %27 : f32 to vector<1x16x16xf32>
    %29 = arith.mulf %28, %1 : vector<1x16x16xf32>
    %30 = arith.addf %26, %29 : vector<1x16x16xf32>
    %c5 = arith.constant 5 : index
    %31 = memref.load %arg2[%c5] : memref<9xf32, #tpu.memory_space<smem>>
    %32 = vector.broadcast %31 : f32 to vector<1x16x16xf32>
    %33 = arith.mulf %32, %12 : vector<1x16x16xf32>
    %34 = arith.addf %30, %33 : vector<1x16x16xf32>
    %c0_6 = arith.constant 0 : index
    %35 = memref.load %arg3[%c0_6] : memref<1xf32, #tpu.memory_space<smem>>
    %36 = vector.broadcast %35 : f32 to vector<1x16x16xf32>
    %37 = arith.addf %34, %36 : vector<1x16x16xf32>
    %c6 = arith.constant 6 : index
    %38 = memref.load %arg2[%c6] : memref<9xf32, #tpu.memory_space<smem>>
    %39 = vector.broadcast %38 : f32 to vector<1x16x16xf32>
    %40 = arith.mulf %39, %7 : vector<1x16x16xf32>
    %c7 = arith.constant 7 : index
    %41 = memref.load %arg2[%c7] : memref<9xf32, #tpu.memory_space<smem>>
    %42 = vector.broadcast %41 : f32 to vector<1x16x16xf32>
    %43 = arith.mulf %42, %1 : vector<1x16x16xf32>
    %44 = arith.addf %40, %43 : vector<1x16x16xf32>
    %c8 = arith.constant 8 : index
    %45 = memref.load %arg2[%c8] : memref<9xf32, #tpu.memory_space<smem>>
    %46 = vector.broadcast %45 : f32 to vector<1x16x16xf32>
    %47 = arith.mulf %46, %12 : vector<1x16x16xf32>
    %48 = arith.addf %44, %47 : vector<1x16x16xf32>
    %49 = tpu.iota {dimensions = array<i32: 1>} : vector<1x16x16xi32>
    %c0_i32_7 = arith.constant 0 : i32
    %50 = vector.broadcast %c0_i32_7 : i32 to vector<1x16x16xi32>
    %51 = arith.cmpi eq, %49, %50 : vector<1x16x16xi32>
    %c1_i32_8 = arith.constant 1 : i32
    %52 = tpu.dynamic_rotate %23 by %c1_i32_8 dim 1 : vector<1x16x16xf32>, i32 -> vector<1x16x16xf32>
    %cst_9 = arith.constant 0.000000e+00 : f32
    %53 = vector.broadcast %cst_9 : f32 to vector<1x16x16xf32>
    %54 = arith.select %51, %53, %52 : vector<1x16x16xi1>, vector<1x16x16xf32>
    %55 = arith.addf %37, %54 : vector<1x16x16xf32>
    %c15_i32_10 = arith.constant 15 : i32
    %56 = vector.broadcast %c15_i32_10 : i32 to vector<1x16x16xi32>
    %57 = arith.cmpi eq, %49, %56 : vector<1x16x16xi32>
    %c15_i32_11 = arith.constant 15 : i32
    %58 = tpu.dynamic_rotate %48 by %c15_i32_11 dim 1 : vector<1x16x16xf32>, i32 -> vector<1x16x16xf32>
    %cst_12 = arith.constant 0.000000e+00 : f32
    %59 = vector.broadcast %cst_12 : f32 to vector<1x16x16xf32>
    %60 = arith.select %57, %59, %58 : vector<1x16x16xi1>, vector<1x16x16xf32>
    %61 = arith.addf %55, %60 : vector<1x16x16xf32>
    %c0_13 = arith.constant 0 : index
    %c0_14 = arith.constant 0 : index
    %c0_15 = arith.constant 0 : index
    %c0_16 = arith.constant 0 : index
    %62 = vector.load %arg5[%c0_13, %c0_14, %c0_15, %c0_16] : memref<1x1x16x16xf32, #tpu.memory_space<vmem>>, vector<1x1x16x16xf32>
    %63 = vector.shape_cast %62 : vector<1x1x16x16xf32> to vector<1x16x16xf32>
    %64 = vector.shape_cast %61 : vector<1x16x16xf32> to vector<1x1x16x16xf32>
    tpu.vector_store %arg5[%c0_13, %c0_14, %c0_15, %c0_16], %64 {strides = array<i32>} : memref<1x1x16x16xf32, #tpu.memory_space<vmem>>, vector<1x1x16x16xf32>,
    return
  }
  func.func @transform_0(%arg0: i32, %arg1: i32) -> i32 {
    %c0_i32 = arith.constant 0 : i32
    %c0_i32_0 = arith.constant 0 : i32
    return %c0_i32 : i32
  }
  func.func @transform_1(%arg0: i32, %arg1: i32) -> i32 {
    %c0_i32 = arith.constant 0 : i32
    %c0_i32_0 = arith.constant 0 : i32
    return %c0_i32 : i32
  }
  func.func @transform_2(%arg0: i32, %arg1: i32) -> (i32, i32, i32, i32) {
    %c0_i32 = arith.constant 0 : i32
    %c0_i32_0 = arith.constant 0 : i32
    %c0_i32_1 = arith.constant 0 : i32
    return %arg0, %arg1, %c0_i32, %c0_i32_0 : i32, i32, i32, i32
  }
  func.func @transform_3(%arg0: i32, %arg1: i32) -> (i32, i32, i32, i32) {
    %c0_i32 = arith.constant 0 : i32
    %c0_i32_0 = arith.constant 0 : i32
    %c0_i32_1 = arith.constant 0 : i32
    return %arg0, %arg1, %c0_i32, %c0_i32_0 : i32, i32, i32, i32
  }
}

</mosaic_0001>

<llo_original>
// kernel: tpu_custom_call.1
$region0: #{tpu_custom_call.1}
  #allocation0 [shape = 'u32[]', space=smem, size = 0x4, offset = 0x4, fixed_abs, tag = 'smem constant byte address 0x4 - core index']
  #allocation1 [shape = 'u32[144,128]{1,0:T(1,128)}', space=vmem, size = 0x12000, scoped, tag = 'internal scratch']
  #allocation2 [shape = 'f32[1]{0:T(128)S(6)}', space=smem, size = 0x200, scoped, tag = 'scoped memory for tpu_custom_call.1']
  %s0 = inlined_call_operand.vmem [shape: f32[9], index: 0, kind: input, shape index: {}]
  %s1 = inlined_call_operand.<no memory space> [shape: f32[1], index: 1, kind: input, shape index: {}]
  %s2 = inlined_call_operand.hbm [shape: f32[2,4,16,16], index: 2, kind: input, shape index: {}]
  %s3 = inlined_call_operand.hbm [shape: f32[2,4,16,16], index: 3, kind: output, shape index: {}]
  %s4 = sld [smem:[#allocation0]]
  $region53: #{tpu_custom_call.1} parent=0
    _
  %s6 = ssub.s32 1, %s4
  %s7 = scalar_select 0, %s6, %s4
  %8 = sst [smem:[#allocation2]] %s1
  $region1: #{tpu_custom_call.1} parent=0
    #allocation3 [shape = 'u8[512]{0}', space=smem, size = 0x200, scoped, tag = 'input window, operand 0, single buffered']
    #allocation4 [shape = 's32[2]{0}', space=sflag, size = 0x8, scoped, tag = 'scoped memory for tpu_custom_call.1']
    #allocation5 [shape = 's32[2]{0}', space=sflag, size = 0x8, scoped, tag = 'scoped memory for tpu_custom_call.1']
    #allocation6 [shape = 's32[2]{0}', space=sflag, size = 0x8, scoped, tag = 'scoped memory for tpu_custom_call.1']
    #allocation7 [shape = 'u8[16384]{0}', space=vmem, size = 0x4000, scoped, tag = 'input window, operand 2']
    #allocation8 [shape = 'u8[16384]{0}', space=vmem, size = 0x4000, scoped, tag = 'output window, operand 0']
    %9 = vsyncpa [#allocation6], 0
    %10 = vsyncpa [#allocation4], 0
    %s11 = scalar_lea.sflag [#allocation4], 1
    %12 = vsyncpa %s11, 0
    %13 = vsyncpa [#allocation5], 0
    %s14 = scalar_lea.sflag [#allocation5], 1
    %15 = vsyncpa %s14, 0
    loop: start=0, step=1, limit=10
    $region2: #{tpu_custom_call.1} parent=1 // loop_pre_header
      _
    $region3: #{tpu_custom_call.1} parent=1 // loop_header
      %s17 = sphi 0, %s21
      %p18 = scmp.ge.s32.totalorder %s17, 10
      %s24 = sphi 0, %s36
      %s25 = sphi 0, %s32
      %s26 = sphi 0, %s24
      %s27 = sphi 0, %s25
      %s28 = sphi 0, %s26
      %s29 = sphi 0, %s27
      %s37 = sphi 0, %s37
      %s39 = sphi 0, %s37
      %s40 = sphi 0, %s39
      %s54 = sphi 0, %s40
      %s58 = sphi 0, %s58
      %s60 = sphi 0, %s58
      %s61 = sphi 0, %s60
      %s75 = sphi 0, %s61
      %s83 = sphi 0, %s85
      %s86 = sphi 0, %s83
      %s87 = sphi 0, %s86
      %s103 = sphi 0, %s87
      %s111 = sphi 0, %s113
      %s114 = sphi 0, %s111
      %s115 = sphi 0, %s114
      %s131 = sphi 0, %s115
    $region4: #{tpu_custom_call.1} parent=1 // loop_header_branch
      %20 = sbr.rel (%p18) target = $region8
    $region5: #{tpu_custom_call.1} parent=1 // loop_body
      %s22 = ssub.s32 %s17, 1
      %s23 = ssub.s32 %s17, 2
      %s30 = sadd.s32 1, %s25
      %p31 = scmp.ge.s32.totalorder %s30, 4
      %s32 = scalar_select %p31, 0, %s30
      %s33 = sadd.s32 1, %s24
      %s34 = scalar_select %p31, %s33, %s24
      %p35 = scmp.ge.s32.totalorder %s34, 2
      %s36 = scalar_select %p35, 0, %s34
      %s38 = sadd.s32 %s37, 1
      %p41 = scmp.eq.s32.totalorder %s17, 7
      %p42 = scmp.ne.s32.totalorder %s37, %s39
      %p43 = scmp.eq.s32.totalorder %s17, 0
      %p44 = por %p42, %p43
      %p45 = scmp.ne.s32.totalorder %s37, %s39
      %p46 = scmp.eq.s32.totalorder %s22, 7
      %p47 = por %p45, %p46
      %p48 = scmp.ne.s32.totalorder %s39, %s40
      %p49 = scmp.eq.s32.totalorder %s22, 0
      %p50 = por %p48, %p49
      %p51 = scmp.ne.s32.totalorder %s39, %s40
      %p52 = scmp.eq.s32.totalorder %s23, 7
      %p53 = por %p51, %p52
      %p55 = scmp.ne.s32.totalorder %s40, %s54
      %p56 = scmp.eq.s32.totalorder %s23, 0
      %p57 = por %p55, %p56
      %s59 = sadd.s32 %s58, 1
      %p62 = scmp.eq.s32.totalorder %s17, 7
      %p63 = scmp.ne.s32.totalorder %s58, %s60
      %p64 = scmp.eq.s32.totalorder %s17, 0
      %p65 = por %p63, %p64
      %p66 = scmp.ne.s32.totalorder %s58, %s60
      %p67 = scmp.eq.s32.totalorder %s22, 7
      %p68 = por %p66, %p67
      %p69 = scmp.ne.s32.totalorder %s60, %s61
      %p70 = scmp.eq.s32.totalorder %s22, 0
      %p71 = por %p69, %p70
      %p72 = scmp.ne.s32.totalorder %s60, %s61
      %p73 = scmp.eq.s32.totalorder %s23, 7
      %p74 = por %p72, %p73
      %p76 = scmp.ne.s32.totalorder %s61, %s75
      %p77 = scmp.eq.s32.totalorder %s23, 0
      %p78 = por %p76, %p77
      %s79 = ssub.s32 %s24, %s36
      %s80 = ssub.s32 %s25, %s32
      %s81 = sor.u32 %s79, %s80
      %p82 = scmp.eq.s32.totalorder %s81, 0
      %s84 = sadd.s32 %s83, 1
      %s85 = scalar_select %p82, %s83, %s84
      %p88 = pneg %p82
      %p89 = scmp.eq.s32.totalorder %s17, 7
      %p90 = por %p88, %p89
      %p91 = scmp.ne.s32.totalorder %s83, %s86
      %p92 = scmp.eq.s32.totalorder %s17, 0
      %p93 = por %p91, %p92
      %p94 = scmp.ne.s32.totalorder %s83, %s86
      %p95 = scmp.eq.s32.totalorder %s22, 7
      %p96 = por %p94, %p95
      %p97 = scmp.ne.s32.totalorder %s86, %s87
      %p98 = scmp.eq.s32.totalorder %s22, 0
      %p99 = por %p97, %p98
      %p100 = scmp.ne.s32.totalorder %s86, %s87
      %p101 = scmp.eq.s32.totalorder %s23, 7
      %p102 = por %p100, %p101
      %p104 = scmp.ne.s32.totalorder %s87, %s103
      %p105 = scmp.eq.s32.totalorder %s23, 0
      %p106 = por %p104, %p105
      %s107 = ssub.s32 %s24, %s36
      %s108 = ssub.s32 %s25, %s32
      %s109 = sor.u32 %s107, %s108
      %p110 = scmp.eq.s32.totalorder %s109, 0
      %s112 = sadd.s32 %s111, 1
      %s113 = scalar_select %p110, %s111, %s112
      %p116 = pneg %p110
      %p117 = scmp.eq.s32.totalorder %s17, 7
      %p118 = por %p116, %p117
      %p119 = scmp.ne.s32.totalorder %s111, %s114
      %p120 = scmp.eq.s32.totalorder %s17, 0
      %p121 = por %p119, %p120
      %p122 = scmp.ne.s32.totalorder %s111, %s114
      %p123 = scmp.eq.s32.totalorder %s22, 7
      %p124 = por %p122, %p123
      %p125 = scmp.ne.s32.totalorder %s114, %s115
      %p126 = scmp.eq.s32.totalorder %s22, 0
      %p127 = por %p125, %p126
      %p128 = scmp.ne.s32.totalorder %s114, %s115
      %p129 = scmp.eq.s32.totalorder %s23, 7
      %p130 = por %p128, %p129
      %p132 = scmp.ne.s32.totalorder %s115, %s131
      %p133 = scmp.eq.s32.totalorder %s23, 0
      %p134 = por %p132, %p133
      %p135 = scmp.le.s32.totalorder 1, %s17
      %p136 = scmp.lt.s32.totalorder %s17, 9
      %p137 = pnand %p135, %p136
      %p138 = pneg %p137
      // Predicated region
      $region9: #{tpu_custom_call.1} parent=5 // pred_check
        _
      $region10: #{tpu_custom_call.1} parent=5 // pred_check_branch
        %140 = sbr.rel (%p137) target = $region12
      $region11: #{tpu_custom_call.1} parent=5 // pred_region
        %s141 = ssub.s32 %s17, 1
        // Predicated region
        $region13: #{tpu_custom_call.1} parent=11 // pred_check
          %p142 = pneg %p50
        $region14: #{tpu_custom_call.1} parent=11 // pred_check_branch
          %144 = sbr.rel (%p142) target = $region16
        $region15: #{tpu_custom_call.1} parent=11 // pred_region
          %s146 = ssub.s32 16, 16
          %147 = vsyncadd [#allocation6], %s146
          %s149 = sshll.u32 %s0, 4
          %s150 = int_to_ptr.vmem [resolvable:$true] %s149
          %152 = dma.vmem_to_smem %s150, 16, [#allocation3], [#allocation6]
        $region16: #{tpu_custom_call.1} parent=11 // pred_fallthru
          _
        // Predicated region
        $region17: #{tpu_custom_call.1} parent=11 // pred_check
          %p153 = pneg %p71
        $region18: #{tpu_custom_call.1} parent=11 // pred_check_branch
          %155 = sbr.rel (%p153) target = $region20
        $region19: #{tpu_custom_call.1} parent=11 // pred_region
          _
        $region20: #{tpu_custom_call.1} parent=11 // pred_fallthru
          _
      $region12: #{tpu_custom_call.1} parent=5 // pred_fallthru
        _
      %p156 = scmp.lt.s32.totalorder %s17, 8
      // Predicated region
      $region21: #{tpu_custom_call.1} parent=5 // pred_check
        %p157 = pneg %p156
      $region22: #{tpu_custom_call.1} parent=5 // pred_check_branch
        %159 = sbr.rel (%p157) target = $region24
      $region23: #{tpu_custom_call.1} parent=5 // pred_region
        // Predicated region
        $region25: #{tpu_custom_call.1} parent=23 // pred_check
          %p160 = pneg %p93
        $region26: #{tpu_custom_call.1} parent=23 // pred_check_branch
          %162 = sbr.rel (%p160) target = $region28
        $region27: #{tpu_custom_call.1} parent=23 // pred_region
          %s163 = sand.u32 %s83, 1
          %s164 = scalar_lea.sflag [#allocation4], %s163
          %s165 = sand.u32 %s83, 1
          %s166 = smul.addr %s165, 16
          %s167 = scalar_lea.vmem [#allocation7], %s166
          %s169 = ssub.s32 256, 256
          %170 = vsyncadd %s164, %s169
          %s171 = smul.addr %s25, 2
          %s172 = smul.addr %s24, 8
          %s173 = sadd.s32 %s171, %s172
          %s174 = smul.addr %s173, 128
          %s175 = scalar_lea.hbm %s2, %s174
          %s176 = sshll.u32 %s167, 4
          %s177 = int_to_ptr.vmem [resolvable:$true] %s176
          %182 = dma.hbm_to_vmem [thread:$0]  %s175, 256, %s177, %s164, 128, 128, 8
        $region28: #{tpu_custom_call.1} parent=23 // pred_fallthru
          _
      $region24: #{tpu_custom_call.1} parent=5 // pred_fallthru
        _
      %p183 = scmp.le.s32.totalorder 1, %s17
      %p184 = scmp.lt.s32.totalorder %s17, 9
      %p185 = pnand %p183, %p184
      %p186 = pneg %p185
      // Predicated region
      $region29: #{tpu_custom_call.1} parent=5 // pred_check
        _
      $region30: #{tpu_custom_call.1} parent=5 // pred_check_branch
        %188 = sbr.rel (%p185) target = $region32
      $region31: #{tpu_custom_call.1} parent=5 // pred_region
        %s189 = ssub.s32 %s17, 1
        // Predicated region
        $region33: #{tpu_custom_call.1} parent=31 // pred_check
          %p190 = pneg %p50
        $region34: #{tpu_custom_call.1} parent=31 // pred_check_branch
          %192 = sbr.rel (%p190) target = $region36
        $region35: #{tpu_custom_call.1} parent=31 // pred_region
          %193 = dma.done [#allocation6], 16
        $region36: #{tpu_custom_call.1} parent=31 // pred_fallthru
          _
        %s194 = sand.u32 %s86, 1
        %s195 = scalar_lea.sflag [#allocation4], %s194
        %s196 = sand.u32 %s86, 1
        %s197 = smul.addr %s196, 16
        %s198 = scalar_lea.vmem [#allocation7], %s197
        // Predicated region
        $region37: #{tpu_custom_call.1} parent=31 // pred_check
          %p199 = pneg %p99
        $region38: #{tpu_custom_call.1} parent=31 // pred_check_branch
          %201 = sbr.rel (%p199) target = $region40
        $region39: #{tpu_custom_call.1} parent=31 // pred_region
          %202 = dma.done %s195, 256
        $region40: #{tpu_custom_call.1} parent=31 // pred_fallthru
          _
        %203 = sfence
        %p204 = pneg %p50
        %p205 = pneg %p47
        %p206 = pneg %p71
        %p207 = pneg %p68
        %s208 = sand.u32 %s86, 1
        %s209 = scalar_lea.sflag [#allocation4], %s208
        %s210 = sand.u32 %s86, 1
        %s211 = smul.addr %s210, 16
        %s212 = scalar_lea.vmem [#allocation7], %s211
        %p213 = pneg %p99
        %p214 = pneg %p96
        %p215 = pneg %p127
        %p216 = pneg %p124
        %s217 = sand.u32 %s114, 1
        %s218 = scalar_lea.sflag [#allocation5], %s217
        %s219 = sand.u32 %s114, 1
        %s220 = smul.addr %s219, 16
        %s221 = scalar_lea.vmem [#allocation8], %s220
        %v222 = vld [vmem:[%s198] sm:$0xff]
        %v223 = vld [vmem:[%s198 + $0x8] sm:$0xff]
        %v224 = vlaneseq
        %v225 = vand.u32 %v224, 127
        %vm226 = vcmp.eq.s32.totalorder %v225, 0
        %vm227 = vcmask 1047680
        %228 = vrot.lane.b32.xlu0 %v222, 16
        %v229 = vpop.permute.xlu0 %228
        %v230 = vsel %vm227, %v229, %v222
        %231 = vrot.lane.b32.xlu0 %v223, 16
        %v232 = vpop.permute.xlu0 %231
        %v233 = vsel %vm227, %v232, %v223
        %234 = vrot.lane.b32.xlu0 %v230, 16
        %v235 = vpop.permute.xlu0 %234
        %236 = vrot.lane.b32.xlu0 %v233, 16
        %v237 = vpop.permute.xlu0 %236
        %v238 = vsel %vm227, %v235, %v222
        %v239 = vsel %vm227, %v237, %v223
        %242 = vrot.lane.b32.xlu0 %v238, 113
        %v243 = vpop.permute.xlu0 %242
        %244 = vrot.lane.b32.xlu0 %v239, 113
        %v245 = vpop.permute.xlu0 %244
        %v248 = vsel %vm226, 0.0, %v243
        %v249 = vsel %vm226, 0.0, %v245
        %vm250 = vcmp.eq.s32.totalorder %v225, 15
        %251 = vrot.lane.b32.xlu0 %v238, 127
        %v252 = vpop.permute.xlu0 %251
        %253 = vrot.lane.b32.xlu0 %v239, 127
        %v254 = vpop.permute.xlu0 %253
        %v257 = vsel %vm250, 0.0, %v252
        %v258 = vsel %vm250, 0.0, %v254
        %s259 = sld [smem:[#allocation3]]
        %v260 = vstv %s259
        %v261 = vmul.f32 %v260, %v248
        %v262 = vmul.f32 %v260, %v249
        %s263 = sld [smem:[#allocation3 + $0x1]]
        %v264 = vstv %s263
        %v265 = vmul.f32 %v264, %v222
        %v266 = vmul.f32 %v264, %v223
        %v267 = vadd.f32 %v261, %v265
        %v268 = vadd.f32 %v262, %v266
        %s269 = sld [smem:[#allocation3 + $0x2]]
        %v270 = vstv %s269
        %v271 = vmul.f32 %v270, %v257
        %v272 = vmul.f32 %v270, %v258
        %v273 = vadd.f32 %v267, %v271
        %v274 = vadd.f32 %v268, %v272
        %s275 = sld [smem:[#allocation3 + $0x3]]
        %v276 = vstv %s275
        %v277 = vmul.f32 %v276, %v248
        %v278 = vmul.f32 %v276, %v249
        %s279 = sld [smem:[#allocation3 + $0x4]]
        %v280 = vstv %s279
        %v281 = vmul.f32 %v280, %v222
        %v282 = vmul.f32 %v280, %v223
        %v283 = vadd.f32 %v277, %v281
        %v284 = vadd.f32 %v278, %v282
        %s285 = sld [smem:[#allocation3 + $0x5]]
        %v286 = vstv %s285
        %v287 = vmul.f32 %v286, %v257
        %v288 = vmul.f32 %v286, %v258
        %v289 = vadd.f32 %v283, %v287
        %v290 = vadd.f32 %v284, %v288
        %s291 = sld [smem:[#allocation2]]
        %v292 = vstv %s291
        %v293 = vadd.f32 %v289, %v292
        %v294 = vadd.f32 %v290, %v292
        %s295 = sld [smem:[#allocation3 + $0x6]]
        %v296 = vstv %s295
        %v297 = vmul.f32 %v296, %v248
        %v298 = vmul.f32 %v296, %v249
        %s299 = sld [smem:[#allocation3 + $0x7]]
        %v300 = vstv %s299
        %v301 = vmul.f32 %v300, %v222
        %v302 = vmul.f32 %v300, %v223
        %v303 = vadd.f32 %v297, %v301
        %v304 = vadd.f32 %v298, %v302
        %s305 = sld [smem:[#allocation3 + $0x8]]
        %v306 = vstv %s305
        %v307 = vmul.f32 %v306, %v257
        %v308 = vmul.f32 %v306, %v258
        %v309 = vadd.f32 %v303, %v307
        %v310 = vadd.f32 %v304, %v308
        %v311 = vlaneseq
        %v312 = vshrl.u32 %v311, 7
        %v313 = vadd.s32 %v312, 8
        %vm314 = vcmp.eq.s32.totalorder %v312, 0
        %vm315 = vcmp.eq.s32.totalorder %v313, 0
        %v316 = vrot.slane %v273, 7
        %v317 = vrot.slane %v274, 7
        %vm318 = vcmp.lt.s32.totalorder %v312, 1
        %v319 = vsel %vm318, %v316, %v317
        %v320 = vsel %vm318, %v317, %v316
        %v321 = vsel %vm314, 0.0, %v320
        %v322 = vsel %vm315, 0.0, %v319
        %v323 = vadd.f32 %v293, %v321
        %v324 = vadd.f32 %v294, %v322
        %vm325 = vcmp.eq.s32.totalorder %v312, 15
        %vm326 = vcmp.eq.s32.totalorder %v313, 15
        %v327 = vrot.slane %v309, 1
        %v328 = vrot.slane %v310, 1
        %vm329 = vcmp.lt.s32.totalorder %v312, 7
        %v330 = vsel %vm329, %v327, %v328
        %v331 = vsel %vm329, %v328, %v327
        %v332 = vsel %vm325, 0.0, %v330
        %v333 = vsel %vm326, 0.0, %v331
        %v334 = vadd.f32 %v323, %v332
        %v335 = vadd.f32 %v324, %v333
        %vm336 = vcmask 130048
        %337 = vst.msk [vmem:[%s221] sm:$0xff] %vm336, %v334
        %338 = vst.msk [vmem:[%s221 + $0x8] sm:$0xff] %vm336, %v335
        %s339 = sand.u32 %s114, 1
        %s340 = scalar_lea.sflag [#allocation5], %s339
        %s341 = sand.u32 %s114, 1
        %s342 = smul.addr %s341, 16
        %s343 = scalar_lea.vmem [#allocation8], %s342
        // Predicated region
        $region41: #{tpu_custom_call.1} parent=31 // pred_check
          %p344 = pneg %p124
        $region42: #{tpu_custom_call.1} parent=31 // pred_check_branch
          %346 = sbr.rel (%p344) target = $region44
        $region43: #{tpu_custom_call.1} parent=31 // pred_region
          %s348 = ssub.s32 256, 256
          %349 = vsyncadd %s340, %s348
          %s350 = smul.addr %s27, 2
          %s351 = smul.addr %s26, 8
          %s352 = sadd.s32 %s350, %s351
          %s353 = smul.addr %s352, 128
          %s354 = scalar_lea.hbm %s3, %s353
          %s355 = sshll.u32 %s343, 4
          %s356 = int_to_ptr.vmem [resolvable:$true] %s355
          %361 = dma.vmem_to_hbm [thread:$0]  %s356, 256, %s354, %s340, 128, 128, 8
        $region44: #{tpu_custom_call.1} parent=31 // pred_fallthru
          _
      $region32: #{tpu_custom_call.1} parent=5 // pred_fallthru
        _
      %p362 = scmp.le.s32.totalorder 2, %s17
      // Predicated region
      $region45: #{tpu_custom_call.1} parent=5 // pred_check
        %p363 = pneg %p362
      $region46: #{tpu_custom_call.1} parent=5 // pred_check_branch
        %365 = sbr.rel (%p363) target = $region48
      $region47: #{tpu_custom_call.1} parent=5 // pred_region
        %s366 = ssub.s32 %s17, 2
        // Predicated region
        $region49: #{tpu_custom_call.1} parent=47 // pred_check
          %p367 = pneg %p130
        $region50: #{tpu_custom_call.1} parent=47 // pred_check_branch
          %369 = sbr.rel (%p367) target = $region52
        $region51: #{tpu_custom_call.1} parent=47 // pred_region
          %s370 = sand.u32 %s115, 1
          %s371 = scalar_lea.sflag [#allocation5], %s370
          %s372 = sand.u32 %s115, 1
          %s373 = smul.addr %s372, 16
          %s374 = scalar_lea.vmem [#allocation8], %s373
          %375 = dma.done %s371, 256
        $region52: #{tpu_custom_call.1} parent=47 // pred_fallthru
          _
      $region48: #{tpu_custom_call.1} parent=5 // pred_fallthru
        _
    $region6: #{tpu_custom_call.1} parent=1 // loop_footer
      %s21 = sadd.s32 1, %s17
    $region7: #{tpu_custom_call.1} parent=1 // loop_footer_branch
      %16 = sbr.rel target = $region3
    $region8: #{tpu_custom_call.1} parent=1 // loop_exit
      _
    %376 = vsyncpa [#allocation4], 1
    %s377 = scalar_lea.sflag [#allocation4], 1
    %378 = vsyncpa %s377, 1
    %379 = vsyncpa [#allocation5], 1
    %s380 = scalar_lea.sflag [#allocation5], 1
    %381 = vsyncpa %s380, 1
    %382 = vsyncpa [#allocation6], 1
    %s383 = scalar_lea.sflag [#allocation6], 1
    %384 = vsyncpa %s383, 1

</llo_original>
